<compile_context>
chip_gen: v7x
topology: tpu7x:2x2x1
jax: 0.10.0
libtpu: 0.0.40
codegen_flags: <defaults>
</compile_context>

<pallas_src>
from math import floor

import jax
import jax.numpy as jnp
from jax.experimental import pallas as pl
from jax.experimental.pallas import tpu as pltpu


def conv2d_output_size(img_size, padding, kernel_size, stride):
    return (
        floor((img_size[0] + 2 * padding[0] - (kernel_size[0] - 1) - 1) / stride[0] + 1),
        floor((img_size[1] + 2 * padding[1] - (kernel_size[1] - 1) - 1) / stride[1] + 1),
    )


def _round_up(x, m):
    return ((x + m - 1) // m) * m


def _plan(H, W, ksizes):
    """Static geometry.  All flat indices live on the stage-1 grid (row stride W).

      conv1 output (i, j)  -> flat column i*W + j
      pool1 output (r, c)  -> flat column 2*(r*W + c)   (kept in place)
      conv2 output (r, c)  -> flat column 2*(r*W + c)
      pool2 output (u, v)  -> flat column 4*(u*W + v)
    """
    (KH1, KW1), (KH2, KW2) = ksizes
    Ho1, Wo1 = H - KH1 + 1, W - KW1 + 1          # conv1 output
    Hp1, Wp1 = Ho1 // 2, Wo1 // 2                # pool1 output (floor)
    Ho2, Wo2 = Hp1 - KH2 + 1, Wp1 - KW2 + 1      # conv2 output
    Hp2, Wp2 = Ho2 // 2, Wo2 // 2                # pool2 output (floor)
    assert min(Ho1, Wo1, Hp1, Wp1, Ho2, Wo2, Hp2, Wp2) >= 1, "image too small"

    # Maximum (row, col) reach, in input-pixel coordinates, of any value that
    # actually feeds fc1.  The in-place flat-grid scheme is only valid if no
    # selected value ever reads a wrapped-around column (next image row) or a
    # neighbouring sample -- these asserts guarantee it for arbitrary geometry.
    row_reach = 4 * (Hp2 - 1) + 2 + 2 * (KH2 - 1) + 1 + (KH1 - 1)
    col_reach = 4 * (Wp2 - 1) + 2 + 2 * (KW2 - 1) + 1 + (KW1 - 1)
    assert row_reach <= H - 1, "flat-grid scheme would read past the last row"
    assert col_reach <= W - 1, "flat-grid scheme would wrap around a row edge"

    chain = row_reach * W + col_reach + 1        # flat extent read per sample
    S1 = _round_up(max(H * W, chain), 128)       # per-sample slab, lane aligned
    L2_req = 4 * (Hp2 - 1) * W + 4 * (Wp2 - 1) + 1
    return dict(H=H, W=W, KH1=KH1, KW1=KW1, KH2=KH2, KW2=KW2,
                Hp2=Hp2, Wp2=Wp2, S1=S1, L2_req=L2_req)


def make_fused_cnn2d_kernel(plan, B, n_out):
    W, S1 = plan["W"], plan["S1"]
    KH1, KW1, KH2, KW2 = plan["KH1"], plan["KW1"], plan["KH2"], plan["KW2"]
    Hp2, Wp2, L2_req = plan["Hp2"], plan["Wp2"], plan["L2_req"]

    offs1 = [ky * W + kx for ky in range(KH1) for kx in range(KW1)]
    offs2 = [2 * (ky * W + kx) for ky in range(KH2) for kx in range(KW2)]
    pool1_shifts = (1, W, W + 1)
    pool2_shifts = (2, 2 * W, 2 * W + 2)
    fc_pos = [4 * (u * W + v) for u in range(Hp2) for v in range(Wp2)]
    npos = len(fc_pos)

    # Global (per grid step, B samples wide) slab widths.  They telescope down
    # from G by the max shift at each stage, so every lane slice is in bounds.
    G = B * S1
    M1g = G - max(offs1)                 # conv1 output slab
    L1g = M1g - (W + 1)                  # pool1 slab
    M2g = L1g - max(offs2)               # conv2 output slab
    L2g = M2g - (2 * W + 2)              # pool2 slab
    Wfc = (B - 1) * S1 + 1               # fc accumulation window
    # Coverage: the last sample's last fc position must land inside every slab.
    assert (B - 1) * S1 + L2_req <= L2g

    def kernel(x_ref, w1_ref, b1_ref, w2_ref, b2_ref, wq_ref, bfc_ref, o_ref):
        x = x_ref[...]                                                  # (Cin_p, G)

        # ---- stage 1: conv1 (BN scale pre-folded) + shift + relu, one MXU dot
        xcol1 = jnp.concatenate([x[:, o:o + M1g] for o in offs1], axis=0)
        y1 = jnp.dot(w1_ref[...], xcol1, preferred_element_type=jnp.float32)
        y1 = jnp.maximum(y1 + b1_ref[...], 0.0)                         # (C1, M1g)

        # ---- pool1: 2x2 stride-2 max = VPU max of 4 shifted lane-slices ----
        m1 = y1[:, :L1g]
        for s in pool1_shifts:
            m1 = jnp.maximum(m1, y1[:, s:s + L1g])                      # (C1, L1g)

        # ---- stage 2: conv2 (BN scale pre-folded) + shift + relu ----
        xcol2 = jnp.concatenate([m1[:, o:o + M2g] for o in offs2], axis=0)
        y2 = jnp.dot(w2_ref[...], xcol2, preferred_element_type=jnp.float32)
        y2 = jnp.maximum(y2 + b2_ref[...], 0.0)                         # (C2, M2g)

        # ---- pool2 ----
        m2 = y2[:, :L2g]
        for s in pool2_shifts:
            m2 = jnp.maximum(m2, y2[:, s:s + L2g])                      # (C2, L2g)

        # ---- fc1: contract channels on the MXU, then accumulate the Hp2*Wp2
        #      spatial positions as shifted lane-slices (same pattern as the
        #      conv taps); finally pick one column per sample -> (n_out, B).
        t = jnp.dot(wq_ref[...], m2, preferred_element_type=jnp.float32)  # (npos*n_out, L2g)
        acc = t[0:n_out, fc_pos[0]:fc_pos[0] + Wfc]
        for p in range(1, npos):
            acc = acc + t[p * n_out:(p + 1) * n_out, fc_pos[p]:fc_pos[p] + Wfc]
        out = jnp.concatenate([acc[:, b * S1:b * S1 + 1] for b in range(B)], axis=1)
        o_ref[0] = out + bfc_ref[...]                                   # (n_out, B)

    return kernel


def cnn2d_forward(params, x_nchw, batch_tile=8, eps=1e-5):
    N, Cin, H, W = x_nchw.shape
    C1, _, KH1, KW1 = params["conv1_w"].shape
    C2, _, KH2, KW2 = params["conv2_w"].shape
    n_out = params["fc1_w"].shape[0]
    plan = _plan(H, W, ((KH1, KW1), (KH2, KW2)))
    S1, Hp2, Wp2 = plan["S1"], plan["Hp2"], plan["Wp2"]
    npos = Hp2 * Wp2
    f32 = jnp.float32

    B = max(1, min(batch_tile, N))       # samples per grid step
    Np = _round_up(N, B)
    num_tiles = Np // B
    Cin_p = _round_up(Cin, 8)            # sublane-align the im2col tap blocks
    K1 = KH1 * KW1 * Cin_p
    K2 = KH2 * KW2 * C1

    # -- activations: NCHW -> (Cin_p, Np*S1), samples concatenated along lanes
    #    with per-sample stride S1 (one XLA transpose; everything else fused).
    x = x_nchw.astype(f32).reshape(N, Cin, H * W)
    x = jnp.pad(x, ((0, Np - N), (0, Cin_p - Cin), (0, S1 - H * W)))
    x = jnp.transpose(x, (1, 0, 2)).reshape(Cin_p, Np * S1)

    # -- eval-mode BN: scale folded into conv weights, shift stays in-kernel
    s1 = (params["bn1_gamma"] / jnp.sqrt(params["bn1_var"] + eps)).astype(f32)
    s2 = (params["bn2_gamma"] / jnp.sqrt(params["bn2_var"] + eps)).astype(f32)
    b1 = (params["bn1_beta"] + (params["conv1_b"] - params["bn1_mean"]) * s1)
    b2 = (params["bn2_beta"] + (params["conv2_b"] - params["bn2_mean"]) * s2)
    b1 = b1.astype(f32).reshape(C1, 1)
    b2 = b2.astype(f32).reshape(C2, 1)

    w1 = jnp.transpose(params["conv1_w"].astype(f32), (0, 2, 3, 1))      # (C1,KH1,KW1,Cin)
    w1 = jnp.pad(w1, ((0, 0), (0, 0), (0, 0), (0, Cin_p - Cin))).reshape(C1, K1)
    w1 = w1 * s1[:, None]
    w2 = jnp.transpose(params["conv2_w"].astype(f32), (0, 2, 3, 1)).reshape(C2, K2)
    w2 = w2 * s2[:, None]

    # -- fc1 weight: (n_out, C2*Hp2*Wp2) -> (npos*n_out, C2); row p*n_out + j
    #    holds fc_w[j, :, u, v] with p = u*Wp2 + v (matches fc_pos in-kernel).
    wq = jnp.transpose(params["fc1_w"].astype(f32).reshape(n_out, C2, npos), (2, 0, 1))
    wq = wq.reshape(npos * n_out, C2)
    bfc = params["fc1_b"].astype(f32).reshape(n_out, 1)

    kernel = make_fused_cnn2d_kernel(plan, B, n_out)

    out = pl.pallas_call(
        kernel,
        out_shape=jax.ShapeDtypeStruct((num_tiles, n_out, B), f32),
        grid_spec=pltpu.PrefetchScalarGridSpec(
            num_scalar_prefetch=0,
            grid=(num_tiles,),
            in_specs=[
                pl.BlockSpec((Cin_p, B * S1), lambda t: (0, t)),
                pl.BlockSpec((C1, K1), lambda t: (0, 0)),
                pl.BlockSpec((C1, 1), lambda t: (0, 0)),
                pl.BlockSpec((C2, K2), lambda t: (0, 0)),
                pl.BlockSpec((C2, 1), lambda t: (0, 0)),
                pl.BlockSpec((npos * n_out, C2), lambda t: (0, 0)),
                pl.BlockSpec((n_out, 1), lambda t: (0, 0)),
            ],
            out_specs=pl.BlockSpec((1, n_out, B), lambda t: (t, 0, 0)),
        ),
        compiler_params=pltpu.CompilerParams(
            dimension_semantics=("parallel",),
            vmem_limit_bytes=32 * 1024 * 1024,
        ),
    )(x, w1, b1, w2, b2, wq, bfc)

    # (num_tiles, n_out, B) -> (N, n_out), dropping batch padding.
    return jnp.transpose(out, (0, 2, 1)).reshape(Np, n_out)[:N]


# ----------------------------------------------------------------------------
# Parameters (PyTorch-shaped) and a pure-JAX reference for validation
# ----------------------------------------------------------------------------
def init_params(key, *, img_x, img_y, ksizes, k_ns, n_chans, n_out):
    keys = jax.random.split(key, 14)

    def norm(k, shape, s=0.1):
        return s * jax.random.normal(k, shape, jnp.float32)

    p = {
        "conv1_w": norm(keys[0], (k_ns[0], n_chans, ksizes[0][0], ksizes[0][1])),
        "conv1_b": norm(keys[1], (k_ns[0],)),
        "bn1_gamma": 1.0 + 0.1 * jax.random.normal(keys[2], (k_ns[0],), jnp.float32),
        "bn1_beta": norm(keys[3], (k_ns[0],)),
        "bn1_mean": norm(keys[4], (k_ns[0],)),
        "bn1_var": jnp.abs(jax.random.normal(keys[5], (k_ns[0],), jnp.float32)) + 0.5,
        "conv2_w": norm(keys[6], (k_ns[1], k_ns[0], ksizes[1][0], ksizes[1][1])),
        "conv2_b": norm(keys[7], (k_ns[1],)),
        "bn2_gamma": 1.0 + 0.1 * jax.random.normal(keys[8], (k_ns[1],), jnp.float32),
        "bn2_beta": norm(keys[9], (k_ns[1],)),
        "bn2_mean": norm(keys[10], (k_ns[1],)),
        "bn2_var": jnp.abs(jax.random.normal(keys[11], (k_ns[1],), jnp.float32)) + 0.5,
    }

    out = conv2d_output_size((img_x, img_y), (0, 0), ksizes[0], (1, 1))
    out = (floor((out[0] - 2) / 2) + 1, floor((out[1] - 2) / 2) + 1)
    out = conv2d_output_size(out, (0, 0), ksizes[1], (1, 1))
    out = (floor((out[0] - 2) / 2) + 1, floor((out[1] - 2) / 2) + 1)
    feat = k_ns[-1] * out[0] * out[1]

    p["fc1_w"] = norm(keys[12], (n_out, feat))   # PyTorch (out_features, in_features)
    p["fc1_b"] = norm(keys[13], (n_out,))
    return p


def _reference_forward(params, x, eps=1e-5):
    x = x.astype(jnp.float32)

    def conv(x, w, b):
        O, C, kh, kw = w.shape
        N, _, H, Wd = x.shape
        Ho, Wo = H - kh + 1, Wd - kw + 1
        cols = jnp.stack([x[:, :, i:i + Ho, j:j + Wo]
                          for i in range(kh) for j in range(kw)], axis=2)
        y = jnp.einsum("nckhw,ock->nohw", cols, w.reshape(O, C, kh * kw),
                       precision=jax.lax.Precision.HIGHEST)
        return y + b[None, :, None, None]

    def bn(x, g, bta, mean, var):
        return (x - mean[None, :, None, None]) / jnp.sqrt(var[None, :, None, None] + eps) \
            * g[None, :, None, None] + bta[None, :, None, None]

    def pool(x):
        N, C, H, Wd = x.shape
        Hp, Wp = H // 2, Wd // 2
        return x[:, :, :2 * Hp, :2 * Wp].reshape(N, C, Hp, 2, Wp, 2).max(axis=(3, 5))

    y = pool(jax.nn.relu(bn(conv(x, params["conv1_w"], params["conv1_b"]),
                            params["bn1_gamma"], params["bn1_beta"],
                            params["bn1_mean"], params["bn1_var"])))
    y = pool(jax.nn.relu(bn(conv(y, params["conv2_w"], params["conv2_b"]),
                            params["bn2_gamma"], params["bn2_beta"],
                            params["bn2_mean"], params["bn2_var"])))
    y = y.reshape(y.shape[0], -1)
    return y @ params["fc1_w"].T + params["fc1_b"]


if __name__ == "__main__":
    # Small, module-consistent shapes: batch=2, n_chans=4, 16x16 images,
    # k_ns=(8, 16), 3x3 kernels, n_out=1.
    img_x, img_y = 16, 16
    ksizes = ((3, 3), (3, 3))
    k_ns = (8, 16)
    n_chans = 4
    n_out = 1
    batch = 2

    key = jax.random.PRNGKey(0)
    k_params, k_x = jax.random.split(key)
    params = init_params(k_params, img_x=img_x, img_y=img_y, ksizes=ksizes,
                         k_ns=k_ns, n_chans=n_chans, n_out=n_out)
    x = jax.random.normal(k_x, (batch, n_chans, img_x, img_y), jnp.float32)  # NCHW

    out = jax.jit(cnn2d_forward)(params, x)
    out = jax.block_until_ready(out)

    ref = _reference_forward(params, x)

    assert out.shape == (batch, n_out), out.shape
    assert bool(jnp.all(jnp.isfinite(out)))
    assert bool(jnp.allclose(out, ref, rtol=5e-2, atol=5e-2)), (out, ref)
    print("KERNEL_OK")
</pallas_src>

<mosaic_0001>
module attributes {stable_mosaic.version = 11 : i64} {
  func.func @kernel(%arg0: i32, %arg1: memref<8x512xf32, #tpu.memory_space<vmem>>, %arg2: memref<8x72xf32, #tpu.memory_space<vmem>>, %arg3: memref<8x1xf32, #tpu.memory_space<vmem>>, %arg4: memref<16x72xf32, #tpu.memory_space<vmem>>, %arg5: memref<16x1xf32, #tpu.memory_space<vmem>>, %arg6: memref<4x16xf32, #tpu.memory_space<vmem>>, %arg7: memref<1x1xf32, #tpu.memory_space<vmem>>, %arg8: memref<1x1x2xf32, #tpu.memory_space<vmem>>) attributes {dimension_semantics = [#tpu.dimension_semantics<parallel>], iteration_bounds = array<i64: 1>, scalar_prefetch = 0 : i64, scratch_operands = 0 : i64, tpu.core_type = #tpu.core_type<tc>, window_params = [{transform_indices = @transform_0, window_bounds = array<i64: 8, 512>}, {pipeline_mode = #tpu.pipeline_mode<synchronous>, transform_indices = @transform_1, window_bounds = array<i64: 8, 72>}, {pipeline_mode = #tpu.pipeline_mode<synchronous>, transform_indices = @transform_2, window_bounds = array<i64: 8, 1>}, {pipeline_mode = #tpu.pipeline_mode<synchronous>, transform_indices = @transform_3, window_bounds = array<i64: 16, 72>}, {pipeline_mode = #tpu.pipeline_mode<synchronous>, transform_indices = @transform_4, window_bounds = array<i64: 16, 1>}, {pipeline_mode = #tpu.pipeline_mode<synchronous>, transform_indices = @transform_5, window_bounds = array<i64: 4, 16>}, {pipeline_mode = #tpu.pipeline_mode<synchronous>, transform_indices = @transform_6, window_bounds = array<i64: 1, 1>}, {transform_indices = @transform_7, window_bounds = array<i64: 1, 1, 2>}]} {
    %c0 = arith.constant 0 : index
    %c0_0 = arith.constant 0 : index
    %0 = vector.load %arg1[%c0, %c0_0] : memref<8x512xf32, #tpu.memory_space<vmem>>, vector<8x512xf32>
    %1 = vector.extract_strided_slice %0 {offsets = [0, 0], sizes = [8, 478], strides = [1, 1]} : vector<8x512xf32> to vector<8x478xf32>
    %2 = vector.extract_strided_slice %0 {offsets = [0, 1], sizes = [8, 478], strides = [1, 1]} : vector<8x512xf32> to vector<8x478xf32>
    %3 = vector.extract_strided_slice %0 {offsets = [0, 2], sizes = [8, 478], strides = [1, 1]} : vector<8x512xf32> to vector<8x478xf32>
    %4 = vector.extract_strided_slice %0 {offsets = [0, 16], sizes = [8, 478], strides = [1, 1]} : vector<8x512xf32> to vector<8x478xf32>
    %5 = vector.extract_strided_slice %0 {offsets = [0, 17], sizes = [8, 478], strides = [1, 1]} : vector<8x512xf32> to vector<8x478xf32>
    %6 = vector.extract_strided_slice %0 {offsets = [0, 18], sizes = [8, 478], strides = [1, 1]} : vector<8x512xf32> to vector<8x478xf32>
    %7 = vector.extract_strided_slice %0 {offsets = [0, 32], sizes = [8, 478], strides = [1, 1]} : vector<8x512xf32> to vector<8x478xf32>
    %8 = vector.extract_strided_slice %0 {offsets = [0, 33], sizes = [8, 478], strides = [1, 1]} : vector<8x512xf32> to vector<8x478xf32>
    %9 = vector.extract_strided_slice %0 {offsets = [0, 34], sizes = [8, 478], strides = [1, 1]} : vector<8x512xf32> to vector<8x478xf32>
    %10 = tpu.concatenate %1, %2, %3, %4, %5, %6, %7, %8, %9 in 0 : vector<8x478xf32>, vector<8x478xf32>, vector<8x478xf32>, vector<8x478xf32>, vector<8x478xf32>, vector<8x478xf32>, vector<8x478xf32>, vector<8x478xf32>, vector<8x478xf32> -> vector<72x478xf32>
    %c0_1 = arith.constant 0 : index
    %c0_2 = arith.constant 0 : index
    %11 = vector.load %arg2[%c0_1, %c0_2] : memref<8x72xf32, #tpu.memory_space<vmem>>, vector<8x72xf32>
    %cst = arith.constant dense<0.000000e+00> : vector<8x478xf32>
    %12 = tpu.matmul %11, %10, %cst {dimension_numbers = #tpu.dot_dimension_numbers<[1], [0], [0], [1], [0, 0, 1, 1], [], []>} : vector<8x72xf32>, vector<72x478xf32>, vector<8x478xf32> -> vector<8x478xf32>
    %c0_3 = arith.constant 0 : index
    %c0_4 = arith.constant 0 : index
    %13 = vector.load %arg3[%c0_3, %c0_4] : memref<8x1xf32, #tpu.memory_space<vmem>>, vector<8x1xf32>
    %14 = vector.broadcast %13 : vector<8x1xf32> to vector<8x478xf32>
    %15 = arith.addf %12, %14 : vector<8x478xf32>
    %cst_5 = arith.constant 0.000000e+00 : f32
    %16 = vector.broadcast %cst_5 : f32 to vector<8x478xf32>
    %17 = arith.maximumf %15, %16 : vector<8x478xf32>
    %18 = vector.extract_strided_slice %17 {offsets = [0, 0], sizes = [8, 461], strides = [1, 1]} : vector<8x478xf32> to vector<8x461xf32>
    %19 = vector.extract_strided_slice %17 {offsets = [0, 1], sizes = [8, 461], strides = [1, 1]} : vector<8x478xf32> to vector<8x461xf32>
    %20 = arith.maximumf %18, %19 : vector<8x461xf32>
    %21 = vector.extract_strided_slice %17 {offsets = [0, 16], sizes = [8, 461], strides = [1, 1]} : vector<8x478xf32> to vector<8x461xf32>
    %22 = arith.maximumf %20, %21 : vector<8x461xf32>
    %23 = vector.extract_strided_slice %17 {offsets = [0, 17], sizes = [8, 461], strides = [1, 1]} : vector<8x478xf32> to vector<8x461xf32>
    %24 = arith.maximumf %22, %23 : vector<8x461xf32>
    %25 = vector.extract_strided_slice %24 {offsets = [0, 0], sizes = [8, 393], strides = [1, 1]} : vector<8x461xf32> to vector<8x393xf32>
    %26 = vector.extract_strided_slice %24 {offsets = [0, 2], sizes = [8, 393], strides = [1, 1]} : vector<8x461xf32> to vector<8x393xf32>
    %27 = vector.extract_strided_slice %24 {offsets = [0, 4], sizes = [8, 393], strides = [1, 1]} : vector<8x461xf32> to vector<8x393xf32>
    %28 = vector.extract_strided_slice %24 {offsets = [0, 32], sizes = [8, 393], strides = [1, 1]} : vector<8x461xf32> to vector<8x393xf32>
    %29 = vector.extract_strided_slice %24 {offsets = [0, 34], sizes = [8, 393], strides = [1, 1]} : vector<8x461xf32> to vector<8x393xf32>
    %30 = vector.extract_strided_slice %24 {offsets = [0, 36], sizes = [8, 393], strides = [1, 1]} : vector<8x461xf32> to vector<8x393xf32>
    %31 = vector.extract_strided_slice %24 {offsets = [0, 64], sizes = [8, 393], strides = [1, 1]} : vector<8x461xf32> to vector<8x393xf32>
    %32 = vector.extract_strided_slice %24 {offsets = [0, 66], sizes = [8, 393], strides = [1, 1]} : vector<8x461xf32> to vector<8x393xf32>
    %33 = vector.extract_strided_slice %24 {offsets = [0, 68], sizes = [8, 393], strides = [1, 1]} : vector<8x461xf32> to vector<8x393xf32>
    %34 = tpu.concatenate %25, %26, %27, %28, %29, %30, %31, %32, %33 in 0 : vector<8x393xf32>, vector<8x393xf32>, vector<8x393xf32>, vector<8x393xf32>, vector<8x393xf32>, vector<8x393xf32>, vector<8x393xf32>, vector<8x393xf32>, vector<8x393xf32> -> vector<72x393xf32>
    %c0_6 = arith.constant 0 : index
    %c0_7 = arith.constant 0 : index
    %35 = vector.load %arg4[%c0_6, %c0_7] : memref<16x72xf32, #tpu.memory_space<vmem>>, vector<16x72xf32>
    %cst_8 = arith.constant dense<0.000000e+00> : vector<16x393xf32>
    %36 = tpu.matmul %35, %34, %cst_8 {dimension_numbers = #tpu.dot_dimension_numbers<[1], [0], [0], [1], [0, 0, 1, 1], [], []>} : vector<16x72xf32>, vector<72x393xf32>, vector<16x393xf32> -> vector<16x393xf32>
    %c0_9 = arith.constant 0 : index
    %c0_10 = arith.constant 0 : index
    %37 = vector.load %arg5[%c0_9, %c0_10] : memref<16x1xf32, #tpu.memory_space<vmem>>, vector<16x1xf32>
    %38 = vector.broadcast %37 : vector<16x1xf32> to vector<16x393xf32>
    %39 = arith.addf %36, %38 : vector<16x393xf32>
    %cst_11 = arith.constant 0.000000e+00 : f32
    %40 = vector.broadcast %cst_11 : f32 to vector<16x393xf32>
    %41 = arith.maximumf %39, %40 : vector<16x393xf32>
    %42 = vector.extract_strided_slice %41 {offsets = [0, 0], sizes = [16, 359], strides = [1, 1]} : vector<16x393xf32> to vector<16x359xf32>
    %43 = vector.extract_strided_slice %41 {offsets = [0, 2], sizes = [16, 359], strides = [1, 1]} : vector<16x393xf32> to vector<16x359xf32>
    %44 = arith.maximumf %42, %43 : vector<16x359xf32>
    %45 = vector.extract_strided_slice %41 {offsets = [0, 32], sizes = [16, 359], strides = [1, 1]} : vector<16x393xf32> to vector<16x359xf32>
    %46 = arith.maximumf %44, %45 : vector<16x359xf32>
    %47 = vector.extract_strided_slice %41 {offsets = [0, 34], sizes = [16, 359], strides = [1, 1]} : vector<16x393xf32> to vector<16x359xf32>
    %48 = arith.maximumf %46, %47 : vector<16x359xf32>
    %c0_12 = arith.constant 0 : index
    %c0_13 = arith.constant 0 : index
    %49 = vector.load %arg6[%c0_12, %c0_13] : memref<4x16xf32, #tpu.memory_space<vmem>>, vector<4x16xf32>
    %cst_14 = arith.constant dense<0.000000e+00> : vector<4x359xf32>
    %50 = tpu.matmul %49, %48, %cst_14 {dimension_numbers = #tpu.dot_dimension_numbers<[1], [0], [0], [1], [0, 0, 1, 1], [], []>} : vector<4x16xf32>, vector<16x359xf32>, vector<4x359xf32> -> vector<4x359xf32>
    %51 = vector.extract_strided_slice %50 {offsets = [0, 0], sizes = [1, 257], strides = [1, 1]} : vector<4x359xf32> to vector<1x257xf32>
    %52 = vector.extract_strided_slice %50 {offsets = [1, 4], sizes = [1, 257], strides = [1, 1]} : vector<4x359xf32> to vector<1x257xf32>
    %53 = arith.addf %51, %52 : vector<1x257xf32>
    %54 = vector.extract_strided_slice %50 {offsets = [2, 64], sizes = [1, 257], strides = [1, 1]} : vector<4x359xf32> to vector<1x257xf32>
    %55 = arith.addf %53, %54 : vector<1x257xf32>
    %56 = vector.extract_strided_slice %50 {offsets = [3, 68], sizes = [1, 257], strides = [1, 1]} : vector<4x359xf32> to vector<1x257xf32>
    %57 = arith.addf %55, %56 : vector<1x257xf32>
    %58 = vector.extract_strided_slice %57 {offsets = [0, 0], sizes = [1, 1], strides = [1, 1]} : vector<1x257xf32> to vector<1x1xf32>
    %59 = vector.extract_strided_slice %57 {offsets = [0, 256], sizes = [1, 1], strides = [1, 1]} : vector<1x257xf32> to vector<1x1xf32>
    %60 = tpu.concatenate %58, %59 in 1 : vector<1x1xf32>, vector<1x1xf32> -> vector<1x2xf32>
    %c0_15 = arith.constant 0 : index
    %c0_16 = arith.constant 0 : index
    %61 = vector.load %arg7[%c0_15, %c0_16] : memref<1x1xf32, #tpu.memory_space<vmem>>, vector<1x1xf32>
    %62 = vector.broadcast %61 : vector<1x1xf32> to vector<1x2xf32>
    %63 = arith.addf %60, %62 : vector<1x2xf32>
    %c0_17 = arith.constant 0 : index
    %c0_18 = arith.constant 0 : index
    %c0_19 = arith.constant 0 : index
    %64 = vector.load %arg8[%c0_17, %c0_18, %c0_19] : memref<1x1x2xf32, #tpu.memory_space<vmem>>, vector<1x1x2xf32>
    %65 = vector.shape_cast %64 : vector<1x1x2xf32> to vector<1x2xf32>
    %66 = vector.shape_cast %63 : vector<1x2xf32> to vector<1x1x2xf32>
    tpu.vector_store %arg8[%c0_17, %c0_18, %c0_19], %66 {strides = array<i32>} : memref<1x1x2xf32, #tpu.memory_space<vmem>>, vector<1x1x2xf32>,
    return
  }
  func.func @transform_0(%arg0: i32) -> (i32, i32) {
    %c0_i32 = arith.constant 0 : i32
    %c0_i32_0 = arith.constant 0 : i32
    return %c0_i32, %arg0 : i32, i32
  }
  func.func @transform_1(%arg0: i32) -> (i32, i32) {
    %c0_i32 = arith.constant 0 : i32
    %c0_i32_0 = arith.constant 0 : i32
    %c0_i32_1 = arith.constant 0 : i32
    return %c0_i32, %c0_i32_0 : i32, i32
  }
  func.func @transform_2(%arg0: i32) -> (i32, i32) {
    %c0_i32 = arith.constant 0 : i32
    %c0_i32_0 = arith.constant 0 : i32
    %c0_i32_1 = arith.constant 0 : i32
    return %c0_i32, %c0_i32_0 : i32, i32
  }
  func.func @transform_3(%arg0: i32) -> (i32, i32) {
    %c0_i32 = arith.constant 0 : i32
    %c0_i32_0 = arith.constant 0 : i32
    %c0_i32_1 = arith.constant 0 : i32
    return %c0_i32, %c0_i32_0 : i32, i32
  }
  func.func @transform_4(%arg0: i32) -> (i32, i32) {
    %c0_i32 = arith.constant 0 : i32
    %c0_i32_0 = arith.constant 0 : i32
    %c0_i32_1 = arith.constant 0 : i32
    return %c0_i32, %c0_i32_0 : i32, i32
  }
  func.func @transform_5(%arg0: i32) -> (i32, i32) {
    %c0_i32 = arith.constant 0 : i32
    %c0_i32_0 = arith.constant 0 : i32
    %c0_i32_1 = arith.constant 0 : i32
    return %c0_i32, %c0_i32_0 : i32, i32
  }
  func.func @transform_6(%arg0: i32) -> (i32, i32) {
    %c0_i32 = arith.constant 0 : i32
    %c0_i32_0 = arith.constant 0 : i32
    %c0_i32_1 = arith.constant 0 : i32
    return %c0_i32, %c0_i32_0 : i32, i32
  }
  func.func @transform_7(%arg0: i32) -> (i32, i32, i32) {
    %c0_i32 = arith.constant 0 : i32
    %c0_i32_0 = arith.constant 0 : i32
    %c0_i32_1 = arith.constant 0 : i32
    return %arg0, %c0_i32, %c0_i32_0 : i32, i32, i32
  }
}

</mosaic_0001>

<llo_original>
// kernel: cnn2d_forward.1
$region0: #{cnn2d_forward.1}
  #allocation0 [shape = 'u32[]', space=smem, size = 0x4, offset = 0x4, fixed_abs, tag = 'smem constant byte address 0x4 - core index']
  #allocation1 [shape = 'u32[144,128]{1,0:T(1,128)}', space=vmem, size = 0x12000, scoped, tag = 'internal scratch']
  #allocation2 [shape = 'f32[1,1]{1,0:T(1,128)S(1)}', space=vmem, size = 0x200, scoped, tag = 'scoped memory for cnn2d_forward.1']
  %s0 = inlined_call_operand.vmem [shape: f32[8,512], index: 0, kind: input, shape index: {}]
  %s1 = inlined_call_operand.vmem [shape: f32[8,72], index: 1, kind: input, shape index: {}]
  %s2 = inlined_call_operand.vmem [shape: f32[8,1], index: 2, kind: input, shape index: {}]
  %s3 = inlined_call_operand.vmem [shape: f32[16,72], index: 3, kind: input, shape index: {}]
  %s4 = inlined_call_operand.vmem [shape: f32[16,1], index: 4, kind: input, shape index: {}]
  %s5 = inlined_call_operand.vmem [shape: f32[4,16], index: 5, kind: input, shape index: {}]
  %s6 = inlined_call_operand.<no memory space> [shape: f32[1,1], index: 6, kind: input, shape index: {}]
  %s7 = inlined_call_operand.hbm [shape: f32[1,1,2], index: 7, kind: output, shape index: {}]
  %s8 = sld [smem:[#allocation0]]
  $region38: #{cnn2d_forward.1} parent=0
    _
  %s10 = ssub.s32 1, %s8
  %s11 = scalar_select 0, %s10, %s8
  %v12 = vstv %s6
  %13 = vst [vmem:[#allocation2] sm:$0x1] %v12
  $region1: #{cnn2d_forward.1} parent=0
    #allocation3 [shape = 'u8[512]{0}', space=vmem, size = 0x400, scoped, tag = 'output window, operand 0, single buffered']
    #allocation4 [shape = 's32[1]{0}', space=sflag, size = 0x4, scoped, tag = 'scoped memory for cnn2d_forward.1']
    %14 = vsyncpa [#allocation4], 0
    // Predicated region
    $region2: #{cnn2d_forward.1} parent=1 // pred_check
      _
    $region3: #{cnn2d_forward.1} parent=1 // pred_check_branch
      %16 = sbr.rel (0) target = $region5
    $region4: #{cnn2d_forward.1} parent=1 // pred_region
      _
    $region5: #{cnn2d_forward.1} parent=1 // pred_fallthru
      _
    // Predicated region
    $region6: #{cnn2d_forward.1} parent=1 // pred_check
      _
    $region7: #{cnn2d_forward.1} parent=1 // pred_check_branch
      %18 = sbr.rel (0) target = $region9
    $region8: #{cnn2d_forward.1} parent=1 // pred_region
      _
    $region9: #{cnn2d_forward.1} parent=1 // pred_fallthru
      _
    // Predicated region
    $region10: #{cnn2d_forward.1} parent=1 // pred_check
      _
    $region11: #{cnn2d_forward.1} parent=1 // pred_check_branch
      %20 = sbr.rel (0) target = $region13
    $region12: #{cnn2d_forward.1} parent=1 // pred_region
      _
    $region13: #{cnn2d_forward.1} parent=1 // pred_fallthru
      _
    // Predicated region
    $region14: #{cnn2d_forward.1} parent=1 // pred_check
      _
    $region15: #{cnn2d_forward.1} parent=1 // pred_check_branch
      %22 = sbr.rel (0) target = $region17
    $region16: #{cnn2d_forward.1} parent=1 // pred_region
      _
    $region17: #{cnn2d_forward.1} parent=1 // pred_fallthru
      _
    // Predicated region
    $region18: #{cnn2d_forward.1} parent=1 // pred_check
      _
    $region19: #{cnn2d_forward.1} parent=1 // pred_check_branch
      %24 = sbr.rel (0) target = $region21
    $region20: #{cnn2d_forward.1} parent=1 // pred_region
      _
    $region21: #{cnn2d_forward.1} parent=1 // pred_fallthru
      _
    // Predicated region
    $region22: #{cnn2d_forward.1} parent=1 // pred_check
      _
    $region23: #{cnn2d_forward.1} parent=1 // pred_check_branch
      %26 = sbr.rel (0) target = $region25
    $region24: #{cnn2d_forward.1} parent=1 // pred_region
      _
    $region25: #{cnn2d_forward.1} parent=1 // pred_fallthru
      _
    // Predicated region
    $region26: #{cnn2d_forward.1} parent=1 // pred_check
      _
    $region27: #{cnn2d_forward.1} parent=1 // pred_check_branch
      %28 = sbr.rel (0) target = $region29
    $region28: #{cnn2d_forward.1} parent=1 // pred_region
      _
    $region29: #{cnn2d_forward.1} parent=1 // pred_fallthru
      _
    %v29 = vld [vmem:[%s0] sm:$0xff]
    %v30 = vld [vmem:[%s0 + $0x8] sm:$0xff]
    %v31 = vld [vmem:[%s0 + $0x10] sm:$0xff]
    %v32 = vld [vmem:[%s0 + $0x18] sm:$0xff]
    %37 = vrot.lane.b32.xlu0 %v29, 127
    %v38 = vpop.permute.xlu0 %37
    %39 = vrot.lane.b32.xlu0 %v30, 127
    %v40 = vpop.permute.xlu0 %39
    %41 = vrot.lane.b32.xlu0 %v31, 127
    %v42 = vpop.permute.xlu0 %41
    %43 = vrot.lane.b32.xlu0 %v32, 127
    %v44 = vpop.permute.xlu0 %43
    %vm45 = vcmask 1039360
    %v46 = vsel %vm45, %v38, %v40
    %v47 = vsel %vm45, %v40, %v42
    %v48 = vsel %vm45, %v42, %v44
    %53 = vrot.lane.b32.xlu0 %v29, 126
    %v54 = vpop.permute.xlu0 %53
    %55 = vrot.lane.b32.xlu0 %v30, 126
    %v56 = vpop.permute.xlu0 %55
    %57 = vrot.lane.b32.xlu0 %v31, 126
    %v58 = vpop.permute.xlu0 %57
    %59 = vrot.lane.b32.xlu0 %v32, 126
    %v60 = vpop.permute.xlu0 %59
    %vm61 = vcmask 1031168
    %v62 = vsel %vm61, %v54, %v56
    %v63 = vsel %vm61, %v56, %v58
    %v64 = vsel %vm61, %v58, %v60
    %69 = vrot.lane.b32.xlu0 %v29, 112
    %v70 = vpop.permute.xlu0 %69
    %71 = vrot.lane.b32.xlu0 %v30, 112
    %v72 = vpop.permute.xlu0 %71
    %73 = vrot.lane.b32.xlu0 %v31, 112
    %v74 = vpop.permute.xlu0 %73
    %75 = vrot.lane.b32.xlu0 %v32, 112
    %v76 = vpop.permute.xlu0 %75
    %vm77 = vcmask 916480
    %v78 = vsel %vm77, %v70, %v72
    %v79 = vsel %vm77, %v72, %v74
    %v80 = vsel %vm77, %v74, %v76
    %85 = vrot.lane.b32.xlu0 %v29, 111
    %v86 = vpop.permute.xlu0 %85
    %87 = vrot.lane.b32.xlu0 %v30, 111
    %v88 = vpop.permute.xlu0 %87
    %89 = vrot.lane.b32.xlu0 %v31, 111
    %v90 = vpop.permute.xlu0 %89
    %91 = vrot.lane.b32.xlu0 %v32, 111
    %v92 = vpop.permute.xlu0 %91
    %vm93 = vcmask 908288
    %v94 = vsel %vm93, %v86, %v88
    %v95 = vsel %vm93, %v88, %v90
    %v96 = vsel %vm93, %v90, %v92
    %101 = vrot.lane.b32.xlu0 %v29, 110
    %v102 = vpop.permute.xlu0 %101
    %103 = vrot.lane.b32.xlu0 %v30, 110
    %v104 = vpop.permute.xlu0 %103
    %105 = vrot.lane.b32.xlu0 %v31, 110
    %v106 = vpop.permute.xlu0 %105
    %107 = vrot.lane.b32.xlu0 %v32, 110
    %v108 = vpop.permute.xlu0 %107
    %vm109 = vcmask 900096
    %v110 = vsel %vm109, %v102, %v104
    %v111 = vsel %vm109, %v104, %v106
    %v112 = vsel %vm109, %v106, %v108
    %117 = vrot.lane.b32.xlu0 %v29, 96
    %v118 = vpop.permute.xlu0 %117
    %119 = vrot.lane.b32.xlu0 %v30, 96
    %v120 = vpop.permute.xlu0 %119
    %121 = vrot.lane.b32.xlu0 %v31, 96
    %v122 = vpop.permute.xlu0 %121
    %123 = vrot.lane.b32.xlu0 %v32, 96
    %v124 = vpop.permute.xlu0 %123
    %vm125 = vcmask 785408
    %v126 = vsel %vm125, %v118, %v120
    %v127 = vsel %vm125, %v120, %v122
    %v128 = vsel %vm125, %v122, %v124
    %133 = vrot.lane.b32.xlu0 %v29, 95
    %v134 = vpop.permute.xlu0 %133
    %135 = vrot.lane.b32.xlu0 %v30, 95
    %v136 = vpop.permute.xlu0 %135
    %137 = vrot.lane.b32.xlu0 %v31, 95
    %v138 = vpop.permute.xlu0 %137
    %139 = vrot.lane.b32.xlu0 %v32, 95
    %v140 = vpop.permute.xlu0 %139
    %vm141 = vcmask 777216
    %v142 = vsel %vm141, %v134, %v136
    %v143 = vsel %vm141, %v136, %v138
    %v144 = vsel %vm141, %v138, %v140
    %149 = vrot.lane.b32.xlu0 %v29, 94
    %v150 = vpop.permute.xlu0 %149
    %151 = vrot.lane.b32.xlu0 %v30, 94
    %v152 = vpop.permute.xlu0 %151
    %153 = vrot.lane.b32.xlu0 %v31, 94
    %v154 = vpop.permute.xlu0 %153
    %155 = vrot.lane.b32.xlu0 %v32, 94
    %v156 = vpop.permute.xlu0 %155
    %vm157 = vcmask 769024
    %v158 = vsel %vm157, %v150, %v152
    %v159 = vsel %vm157, %v152, %v154
    %v160 = vsel %vm157, %v154, %v156
    %v165 = vld [vmem:[%s1] sm:$0xff]
    %v166 = vld [vmem:[%s2] sm:$0xff]
    %168 = vset.pattern.permute.xlu0 0
    %169 = vperm.xlu0 %168, %v166
    %v170 = vpop.permute.xlu0 %169
    %vm172 = vcmask 588800
    %v174 = vsel %vm172, %v165, 0
    %176 = vmatprep.subr.mxu0 %v30
    %177 = vmatpush1.msra.mxu0 %v29
    %178 = vmatprep.subr.mxu0 %v47
    %179 = vmatpush1.msra.mxu0 %v46
    %180 = vmatprep.subr.mxu0 %v63
    %181 = vmatpush1.msra.mxu0 %v62
    %182 = vmatprep.subr.mxu0 %v79
    %183 = vmatpush1.msra.mxu0 %v78
    %184 = vmatprep.subr.mxu0 %v95
    %185 = vmatpush1.msra.mxu0 %v94
    %186 = vmatprep.subr.mxu0 %v111
    %187 = vmatpush1.msra.mxu0 %v110
    %188 = vmatprep.subr.mxu0 %v127
    %189 = vmatpush1.msra.mxu0 %v126
    %190 = vmatprep.subr.mxu0 %v143
    %191 = vmatpush1.msra.mxu0 %v142
    %192 = vmatprep.subr.mxu0 %v159
    %193 = vmatpush1.msra.mxu0 %v158
    %194 = vmatprep.subr.mxu0 0.0
    %195 = vmatpush1.msra.mxu0 0.0
    %196 = vmatprep.subr.mxu0 0.0
    %197 = vmatpush1.msra.mxu0 0.0
    %198 = vmatprep.subr.mxu0 0.0
    %199 = vmatpush1.msra.mxu0 0.0
    %200 = vmatprep.subr.mxu0 0.0
    %201 = vmatpush1.msra.mxu0 0.0
    %202 = vmatprep.subr.mxu0 0.0
    %203 = vmatpush1.msra.mxu0 0.0
    %204 = vmatprep.subr.mxu0 0.0
    %205 = vmatpush1.msra.mxu0 0.0
    %206 = vmatprep.subr.mxu0 0.0
    %207 = vmatpush1.msra.mxu0 0.0
    %208 = vmatprep.subr.mxu0 0.0
    %209 = vmatpush1.msra.mxu0 0.0
    %210 = vmatprep.subr.mxu0 0.0
    %211 = vmatpush1.msra.mxu0 0.0
    %212 = vmatprep.subr.mxu0 0.0
    %213 = vmatpush1.msra.mxu0 0.0
    %214 = vmatprep.subr.mxu0 0.0
    %215 = vmatpush1.msra.mxu0 0.0
    %216 = vmatprep.subr.mxu0 0.0
    %217 = vmatpush1.msra.mxu0 0.0
    %218 = vmatprep.subr.mxu0 0.0
    %219 = vmatpush1.msra.mxu0 0.0
    %220 = vmatprep.subr.mxu0 0.0
    %221 = vmatpush1.msra.mxu0 0.0
    %222 = vmatprep.subr.mxu0 0.0
    %223 = vmatpush1.msra.mxu0 0.0
    %224 = vmatprep.subr.mxu0 0.0
    %225 = vmatpush1.msra.mxu0 0.0
    %226 = vmatprep.subr.mxu0 0.0
    %227 = vmatpush1.msra.mxu0 0.0
    %228 = vmatprep.subr.mxu0 0.0
    %229 = vmatpush1.msra.mxu0 0.0
    %230 = vmatprep.subr.mxu0 0.0
    %231 = vmatpush1.msra.mxu0 0.0
    %232 = vmatprep.subr.mxu0 0.0
    %233 = vmatpush1.msra.mxu0 0.0
    %234 = vmatprep.subr.mxu0 0.0
    %235 = vmatpush1.msra.mxu0 0.0
    %236 = vmatprep.subr.mxu0 0.0
    %237 = vmatpush1.msra.mxu0 0.0
    %238 = vmatprep.subr.mxu0 0.0
    %239 = vmatpush1.msra.mxu0 0.0
    %240 = vmatprep.mubr.f32.mxu0 0.0
    %241 = vmatmul.mubr.f32.gmra.mrb[0].mxu0 %v174
    %v242 = vpop.f32.mrb[0].mxu0
    %v243 = vadd.f32 %v170, %v242
    %v244 = vpop.f32.mrb[0].mxu0
    %v245 = vadd.f32 %v170, %v244
    %246 = vdwg.mxu0
    %247 = vmatprep.subr.mxu0 %v32
    %248 = vmatpush1.msra.mxu0 %v31
    %249 = vmatprep.subr.mxu0 %v44
    %250 = vmatpush1.msra.mxu0 %v48
    %251 = vmatprep.subr.mxu0 %v60
    %252 = vmatpush1.msra.mxu0 %v64
    %253 = vmatprep.subr.mxu0 %v76
    %254 = vmatpush1.msra.mxu0 %v80
    %255 = vmatprep.subr.mxu0 %v92
    %256 = vmatpush1.msra.mxu0 %v96
    %257 = vmatprep.subr.mxu0 %v108
    %258 = vmatpush1.msra.mxu0 %v112
    %259 = vmatprep.subr.mxu0 %v124
    %260 = vmatpush1.msra.mxu0 %v128
    %261 = vmatprep.subr.mxu0 %v140
    %262 = vmatpush1.msra.mxu0 %v144
    %263 = vmatprep.subr.mxu0 %v156
    %264 = vmatpush1.msra.mxu0 %v160
    %265 = vmatprep.subr.mxu0 0.0
    %266 = vmatpush1.msra.mxu0 0.0
    %267 = vmatprep.subr.mxu0 0.0
    %268 = vmatpush1.msra.mxu0 0.0
    %269 = vmatprep.subr.mxu0 0.0
    %270 = vmatpush1.msra.mxu0 0.0
    %271 = vmatprep.subr.mxu0 0.0
    %272 = vmatpush1.msra.mxu0 0.0
    %273 = vmatprep.subr.mxu0 0.0
    %274 = vmatpush1.msra.mxu0 0.0
    %275 = vmatprep.subr.mxu0 0.0
    %276 = vmatpush1.msra.mxu0 0.0
    %277 = vmatprep.subr.mxu0 0.0
    %278 = vmatpush1.msra.mxu0 0.0
    %279 = vmatprep.subr.mxu0 0.0
    %280 = vmatpush1.msra.mxu0 0.0
    %281 = vmatprep.subr.mxu0 0.0
    %282 = vmatpush1.msra.mxu0 0.0
    %283 = vmatprep.subr.mxu0 0.0
    %284 = vmatpush1.msra.mxu0 0.0
    %285 = vmatprep.subr.mxu0 0.0
    %286 = vmatpush1.msra.mxu0 0.0
    %287 = vmatprep.subr.mxu0 0.0
    %288 = vmatpush1.msra.mxu0 0.0
    %289 = vmatprep.subr.mxu0 0.0
    %290 = vmatpush1.msra.mxu0 0.0
    %291 = vmatprep.subr.mxu0 0.0
    %292 = vmatpush1.msra.mxu0 0.0
    %293 = vmatprep.subr.mxu0 0.0
    %294 = vmatpush1.msra.mxu0 0.0
    %295 = vmatprep.subr.mxu0 0.0
    %296 = vmatpush1.msra.mxu0 0.0
    %297 = vmatprep.subr.mxu0 0.0
    %298 = vmatpush1.msra.mxu0 0.0
    %299 = vmatprep.subr.mxu0 0.0
    %300 = vmatpush1.msra.mxu0 0.0
    %301 = vmatprep.subr.mxu0 0.0
    %302 = vmatpush1.msra.mxu0 0.0
    %303 = vmatprep.subr.mxu0 0.0
    %304 = vmatpush1.msra.mxu0 0.0
    %305 = vmatprep.subr.mxu0 0.0
    %306 = vmatpush1.msra.mxu0 0.0
    %307 = vmatprep.subr.mxu0 0.0
    %308 = vmatpush1.msra.mxu0 0.0
    %309 = vmatprep.subr.mxu0 0.0
    %310 = vmatpush1.msra.mxu0 0.0
    %311 = vmatprep.mubr.f32.mxu0 0.0
    %312 = vmatmul.mubr.f32.gmra.mrb[0].mxu0 %v174
    %v313 = vpop.f32.mrb[0].mxu0
    %v314 = vadd.f32 %v170, %v313
    %v315 = vpop.f32.mrb[0].mxu0
    %v316 = vadd.f32 %v170, %v315
    %317 = vdwg.mxu0
    %v318 = vmax.f32 %v243, 0.0
    %v319 = vmax.f32 %v245, 0.0
    %v320 = vmax.f32 %v314, 0.0
    %v321 = vmax.f32 %v316, 0.0
    %326 = vrot.lane.b32.xlu0 %v318, 127
    %v327 = vpop.permute.xlu0 %326
    %328 = vrot.lane.b32.xlu0 %v319, 127
    %v329 = vpop.permute.xlu0 %328
    %330 = vrot.lane.b32.xlu0 %v320, 127
    %v331 = vpop.permute.xlu0 %330
    %332 = vrot.lane.b32.xlu0 %v321, 127
    %v333 = vpop.permute.xlu0 %332
    %v334 = vsel %vm45, %v327, %v329
    %v335 = vsel %vm45, %v329, %v331
    %v336 = vsel %vm45, %v331, %v333
    %v341 = vmax.f32 %v318, %v334
    %v342 = vmax.f32 %v319, %v335
    %v343 = vmax.f32 %v320, %v336
    %v344 = vmax.f32 %v321, %v333
    %345 = vrot.lane.b32.xlu0 %v318, 112
    %v346 = vpop.permute.xlu0 %345
    %347 = vrot.lane.b32.xlu0 %v319, 112
    %v348 = vpop.permute.xlu0 %347
    %349 = vrot.lane.b32.xlu0 %v320, 112
    %v350 = vpop.permute.xlu0 %349
    %351 = vrot.lane.b32.xlu0 %v321, 112
    %v352 = vpop.permute.xlu0 %351
    %v353 = vsel %vm77, %v346, %v348
    %v354 = vsel %vm77, %v348, %v350
    %v355 = vsel %vm77, %v350, %v352
    %v360 = vmax.f32 %v341, %v353
    %v361 = vmax.f32 %v342, %v354
    %v362 = vmax.f32 %v343, %v355
    %v363 = vmax.f32 %v344, %v352
    %364 = vrot.lane.b32.xlu0 %v318, 111
    %v365 = vpop.permute.xlu0 %364
    %366 = vrot.lane.b32.xlu0 %v319, 111
    %v367 = vpop.permute.xlu0 %366
    %368 = vrot.lane.b32.xlu0 %v320, 111
    %v369 = vpop.permute.xlu0 %368
    %370 = vrot.lane.b32.xlu0 %v321, 111
    %v371 = vpop.permute.xlu0 %370
    %v372 = vsel %vm93, %v365, %v367
    %v373 = vsel %vm93, %v367, %v369
    %v374 = vsel %vm93, %v369, %v371
    %v379 = vmax.f32 %v360, %v372
    %v380 = vmax.f32 %v361, %v373
    %v381 = vmax.f32 %v362, %v374
    %v382 = vmax.f32 %v363, %v371
    %387 = vrot.lane.b32.xlu0 %v379, 126
    %v388 = vpop.permute.xlu0 %387
    %389 = vrot.lane.b32.xlu0 %v380, 126
    %v390 = vpop.permute.xlu0 %389
    %391 = vrot.lane.b32.xlu0 %v381, 126
    %v392 = vpop.permute.xlu0 %391
    %393 = vrot.lane.b32.xlu0 %v382, 126
    %v394 = vpop.permute.xlu0 %393
    %v395 = vsel %vm61, %v388, %v390
    %v396 = vsel %vm61, %v390, %v392
    %v397 = vsel %vm61, %v392, %v394
    %402 = vrot.lane.b32.xlu0 %v379, 124
    %v403 = vpop.permute.xlu0 %402
    %404 = vrot.lane.b32.xlu0 %v380, 124
    %v405 = vpop.permute.xlu0 %404
    %406 = vrot.lane.b32.xlu0 %v381, 124
    %v407 = vpop.permute.xlu0 %406
    %408 = vrot.lane.b32.xlu0 %v382, 124
    %v409 = vpop.permute.xlu0 %408
    %vm410 = vcmask 1014784
    %v411 = vsel %vm410, %v403, %v405
    %v412 = vsel %vm410, %v405, %v407
    %v413 = vsel %vm410, %v407, %v409
    %418 = vrot.lane.b32.xlu0 %v379, 96
    %v419 = vpop.permute.xlu0 %418
    %420 = vrot.lane.b32.xlu0 %v380, 96
    %v421 = vpop.permute.xlu0 %420
    %422 = vrot.lane.b32.xlu0 %v381, 96
    %v423 = vpop.permute.xlu0 %422
    %424 = vrot.lane.b32.xlu0 %v382, 96
    %v425 = vpop.permute.xlu0 %424
    %v426 = vsel %vm125, %v419, %v421
    %v427 = vsel %vm125, %v421, %v423
    %v428 = vsel %vm125, %v423, %v425
    %433 = vrot.lane.b32.xlu0 %v379, 94
    %v434 = vpop.permute.xlu0 %433
    %435 = vrot.lane.b32.xlu0 %v380, 94
    %v436 = vpop.permute.xlu0 %435
    %437 = vrot.lane.b32.xlu0 %v381, 94
    %v438 = vpop.permute.xlu0 %437
    %439 = vrot.lane.b32.xlu0 %v382, 94
    %v440 = vpop.permute.xlu0 %439
    %v441 = vsel %vm157, %v434, %v436
    %v442 = vsel %vm157, %v436, %v438
    %v443 = vsel %vm157, %v438, %v440
    %448 = vrot.lane.b32.xlu0 %v379, 92
    %v449 = vpop.permute.xlu0 %448
    %450 = vrot.lane.b32.xlu0 %v380, 92
    %v451 = vpop.permute.xlu0 %450
    %452 = vrot.lane.b32.xlu0 %v381, 92
    %v453 = vpop.permute.xlu0 %452
    %454 = vrot.lane.b32.xlu0 %v382, 92
    %v455 = vpop.permute.xlu0 %454
    %vm456 = vcmask 752640
    %v457 = vsel %vm456, %v449, %v451
    %v458 = vsel %vm456, %v451, %v453
    %v459 = vsel %vm456, %v453, %v455
    %464 = vrot.lane.b32.xlu0 %v379, 64
    %v465 = vpop.permute.xlu0 %464
    %466 = vrot.lane.b32.xlu0 %v380, 64
    %v467 = vpop.permute.xlu0 %466
    %468 = vrot.lane.b32.xlu0 %v381, 64
    %v469 = vpop.permute.xlu0 %468
    %470 = vrot.lane.b32.xlu0 %v382, 64
    %v471 = vpop.permute.xlu0 %470
    %vm472 = vcmask 523264
    %v473 = vsel %vm472, %v465, %v467
    %v474 = vsel %vm472, %v467, %v469
    %v475 = vsel %vm472, %v469, %v471
    %480 = vrot.lane.b32.xlu0 %v379, 62
    %v481 = vpop.permute.xlu0 %480
    %482 = vrot.lane.b32.xlu0 %v380, 62
    %v483 = vpop.permute.xlu0 %482
    %484 = vrot.lane.b32.xlu0 %v381, 62
    %v485 = vpop.permute.xlu0 %484
    %486 = vrot.lane.b32.xlu0 %v382, 62
    %v487 = vpop.permute.xlu0 %486
    %vm488 = vcmask 506880
    %v489 = vsel %vm488, %v481, %v483
    %v490 = vsel %vm488, %v483, %v485
    %v491 = vsel %vm488, %v485, %v487
    %496 = vrot.lane.b32.xlu0 %v379, 60
    %v497 = vpop.permute.xlu0 %496
    %498 = vrot.lane.b32.xlu0 %v380, 60
    %v499 = vpop.permute.xlu0 %498
    %500 = vrot.lane.b32.xlu0 %v381, 60
    %v501 = vpop.permute.xlu0 %500
    %502 = vrot.lane.b32.xlu0 %v382, 60
    %v503 = vpop.permute.xlu0 %502
    %vm504 = vcmask 490496
    %v505 = vsel %vm504, %v497, %v499
    %v506 = vsel %vm504, %v499, %v501
    %v507 = vsel %vm504, %v501, %v503
    %v512 = vld [vmem:[%s3] sm:$0xff]
    %v513 = vld [vmem:[%s3 + $0x8] sm:$0xff]
    %v514 = vld [vmem:[%s4] sm:$0xff]
    %v515 = vld [vmem:[%s4 + $0x8] sm:$0xff]
    %517 = vset.pattern.permute.xlu0 0
    %518 = vperm.xlu0 %517, %v514
    %v519 = vpop.permute.xlu0 %518
    %522 = vset.pattern.permute.xlu0 0
    %523 = vperm.xlu0 %522, %v515
    %v524 = vpop.permute.xlu0 %523
    %v527 = vsel %vm172, %v512, 0
    %v530 = vsel %vm172, %v513, 0
    %532 = vmatprep.subr.mxu0 %v380
    %533 = vmatpush1.msra.mxu0 %v379
    %534 = vmatprep.subr.mxu0 %v396
    %535 = vmatpush1.msra.mxu0 %v395
    %536 = vmatprep.subr.mxu0 %v412
    %537 = vmatpush1.msra.mxu0 %v411
    %538 = vmatprep.subr.mxu0 %v427
    %539 = vmatpush1.msra.mxu0 %v426
    %540 = vmatprep.subr.mxu0 %v442
    %541 = vmatpush1.msra.mxu0 %v441
    %542 = vmatprep.subr.mxu0 %v458
    %543 = vmatpush1.msra.mxu0 %v457
    %544 = vmatprep.subr.mxu0 %v474
    %545 = vmatpush1.msra.mxu0 %v473
    %546 = vmatprep.subr.mxu0 %v490
    %547 = vmatpush1.msra.mxu0 %v489
    %548 = vmatprep.subr.mxu0 %v506
    %549 = vmatpush1.msra.mxu0 %v505
    %550 = vmatprep.subr.mxu0 0.0
    %551 = vmatpush1.msra.mxu0 0.0
    %552 = vmatprep.subr.mxu0 0.0
    %553 = vmatpush1.msra.mxu0 0.0
    %554 = vmatprep.subr.mxu0 0.0
    %555 = vmatpush1.msra.mxu0 0.0
    %556 = vmatprep.subr.mxu0 0.0
    %557 = vmatpush1.msra.mxu0 0.0
    %558 = vmatprep.subr.mxu0 0.0
    %559 = vmatpush1.msra.mxu0 0.0
    %560 = vmatprep.subr.mxu0 0.0
    %561 = vmatpush1.msra.mxu0 0.0
    %562 = vmatprep.subr.mxu0 0.0
    %563 = vmatpush1.msra.mxu0 0.0
    %564 = vmatprep.subr.mxu0 0.0
    %565 = vmatpush1.msra.mxu0 0.0
    %566 = vmatprep.subr.mxu0 0.0
    %567 = vmatpush1.msra.mxu0 0.0
    %568 = vmatprep.subr.mxu0 0.0
    %569 = vmatpush1.msra.mxu0 0.0
    %570 = vmatprep.subr.mxu0 0.0
    %571 = vmatpush1.msra.mxu0 0.0
    %572 = vmatprep.subr.mxu0 0.0
    %573 = vmatpush1.msra.mxu0 0.0
    %574 = vmatprep.subr.mxu0 0.0
    %575 = vmatpush1.msra.mxu0 0.0
    %576 = vmatprep.subr.mxu0 0.0
    %577 = vmatpush1.msra.mxu0 0.0
    %578 = vmatprep.subr.mxu0 0.0
    %579 = vmatpush1.msra.mxu0 0.0
    %580 = vmatprep.subr.mxu0 0.0
    %581 = vmatpush1.msra.mxu0 0.0
    %582 = vmatprep.subr.mxu0 0.0
    %583 = vmatpush1.msra.mxu0 0.0
    %584 = vmatprep.subr.mxu0 0.0
    %585 = vmatpush1.msra.mxu0 0.0
    %586 = vmatprep.subr.mxu0 0.0
    %587 = vmatpush1.msra.mxu0 0.0
    %588 = vmatprep.subr.mxu0 0.0
    %589 = vmatpush1.msra.mxu0 0.0
    %590 = vmatprep.subr.mxu0 0.0
    %591 = vmatpush1.msra.mxu0 0.0
    %592 = vmatprep.subr.mxu0 0.0
    %593 = vmatpush1.msra.mxu0 0.0
    %594 = vmatprep.subr.mxu0 0.0
    %595 = vmatpush1.msra.mxu0 0.0
    %596 = vmatprep.mubr.f32.mxu0 0.0
    %597 = vmatmul.mubr.f32.gmra.mrb[0].mxu0 %v527
    %v598 = vpop.f32.mrb[0].mxu0
    %v599 = vadd.f32 %v519, %v598
    %v600 = vpop.f32.mrb[0].mxu0
    %v601 = vadd.f32 %v519, %v600
    %602 = vmatprep.mubr.f32.mxu0 0.0
    %603 = vmatmul.mubr.f32.gmra.mrb[0].mxu0 %v530
    %v604 = vpop.f32.mrb[0].mxu0
    %v605 = vadd.f32 %v524, %v604
    %v606 = vpop.f32.mrb[0].mxu0
    %v607 = vadd.f32 %v524, %v606
    %608 = vdwg.mxu0
    %609 = vmatprep.subr.mxu0 %v382
    %610 = vmatpush1.msra.mxu0 %v381
    %611 = vmatprep.subr.mxu0 %v394
    %612 = vmatpush1.msra.mxu0 %v397
    %613 = vmatprep.subr.mxu0 %v409
    %614 = vmatpush1.msra.mxu0 %v413
    %615 = vmatprep.subr.mxu0 %v425
    %616 = vmatpush1.msra.mxu0 %v428
    %617 = vmatprep.subr.mxu0 %v440
    %618 = vmatpush1.msra.mxu0 %v443
    %619 = vmatprep.subr.mxu0 %v455
    %620 = vmatpush1.msra.mxu0 %v459
    %621 = vmatprep.subr.mxu0 %v471
    %622 = vmatpush1.msra.mxu0 %v475
    %623 = vmatprep.subr.mxu0 %v487
    %624 = vmatpush1.msra.mxu0 %v491
    %625 = vmatprep.subr.mxu0 %v503
    %626 = vmatpush1.msra.mxu0 %v507
    %627 = vmatprep.subr.mxu0 0.0
    %628 = vmatpush1.msra.mxu0 0.0
    %629 = vmatprep.subr.mxu0 0.0
    %630 = vmatpush1.msra.mxu0 0.0
    %631 = vmatprep.subr.mxu0 0.0
    %632 = vmatpush1.msra.mxu0 0.0
    %633 = vmatprep.subr.mxu0 0.0
    %634 = vmatpush1.msra.mxu0 0.0
    %635 = vmatprep.subr.mxu0 0.0
    %636 = vmatpush1.msra.mxu0 0.0
    %637 = vmatprep.subr.mxu0 0.0
    %638 = vmatpush1.msra.mxu0 0.0
    %639 = vmatprep.subr.mxu0 0.0
    %640 = vmatpush1.msra.mxu0 0.0
    %641 = vmatprep.subr.mxu0 0.0
    %642 = vmatpush1.msra.mxu0 0.0
    %643 = vmatprep.subr.mxu0 0.0
    %644 = vmatpush1.msra.mxu0 0.0
    %645 = vmatprep.subr.mxu0 0.0
    %646 = vmatpush1.msra.mxu0 0.0
    %647 = vmatprep.subr.mxu0 0.0
    %648 = vmatpush1.msra.mxu0 0.0
    %649 = vmatprep.subr.mxu0 0.0
    %650 = vmatpush1.msra.mxu0 0.0
    %651 = vmatprep.subr.mxu0 0.0
    %652 = vmatpush1.msra.mxu0 0.0
    %653 = vmatprep.subr.mxu0 0.0
    %654 = vmatpush1.msra.mxu0 0.0
    %655 = vmatprep.subr.mxu0 0.0
    %656 = vmatpush1.msra.mxu0 0.0
    %657 = vmatprep.subr.mxu0 0.0
    %658 = vmatpush1.msra.mxu0 0.0
    %659 = vmatprep.subr.mxu0 0.0
    %660 = vmatpush1.msra.mxu0 0.0
    %661 = vmatprep.subr.mxu0 0.0
    %662 = vmatpush1.msra.mxu0 0.0
    %663 = vmatprep.subr.mxu0 0.0
    %664 = vmatpush1.msra.mxu0 0.0
    %665 = vmatprep.subr.mxu0 0.0
    %666 = vmatpush1.msra.mxu0 0.0
    %667 = vmatprep.subr.mxu0 0.0
    %668 = vmatpush1.msra.mxu0 0.0
    %669 = vmatprep.subr.mxu0 0.0
    %670 = vmatpush1.msra.mxu0 0.0
    %671 = vmatprep.subr.mxu0 0.0
    %672 = vmatpush1.msra.mxu0 0.0
    %673 = vmatprep.mubr.f32.mxu0 0.0
    %674 = vmatmul.mubr.f32.gmra.mrb[0].mxu0 %v527
    %v675 = vpop.f32.mrb[0].mxu0
    %v676 = vadd.f32 %v519, %v675
    %v677 = vpop.f32.mrb[0].mxu0
    %v678 = vadd.f32 %v519, %v677
    %679 = vmatprep.mubr.f32.mxu0 0.0
    %680 = vmatmul.mubr.f32.gmra.mrb[0].mxu0 %v530
    %v681 = vpop.f32.mrb[0].mxu0
    %v682 = vadd.f32 %v524, %v681
    %v683 = vpop.f32.mrb[0].mxu0
    %v684 = vadd.f32 %v524, %v683
    %685 = vdwg.mxu0
    %v686 = vmax.f32 %v599, 0.0
    %v687 = vmax.f32 %v601, 0.0
    %v688 = vmax.f32 %v676, 0.0
    %v689 = vmax.f32 %v678, 0.0
    %v690 = vmax.f32 %v605, 0.0
    %v691 = vmax.f32 %v607, 0.0
    %v692 = vmax.f32 %v682, 0.0
    %v693 = vmax.f32 %v684, 0.0
    %700 = vrot.lane.b32.xlu0 %v686, 126
    %v701 = vpop.permute.xlu0 %700
    %702 = vrot.lane.b32.xlu0 %v687, 126
    %v703 = vpop.permute.xlu0 %702
    %704 = vrot.lane.b32.xlu0 %v688, 126
    %v705 = vpop.permute.xlu0 %704
    %706 = vrot.lane.b32.xlu0 %v690, 126
    %v707 = vpop.permute.xlu0 %706
    %708 = vrot.lane.b32.xlu0 %v691, 126
    %v709 = vpop.permute.xlu0 %708
    %710 = vrot.lane.b32.xlu0 %v692, 126
    %v711 = vpop.permute.xlu0 %710
    %v712 = vsel %vm61, %v701, %v703
    %v713 = vsel %vm61, %v703, %v705
    %v714 = vsel %vm61, %v707, %v709
    %v715 = vsel %vm61, %v709, %v711
    %v722 = vmax.f32 %v686, %v712
    %v723 = vmax.f32 %v687, %v713
    %v724 = vmax.f32 %v688, %v705
    %v725 = vmax.f32 %v690, %v714
    %v726 = vmax.f32 %v691, %v715
    %v727 = vmax.f32 %v692, %v711
    %730 = vrot.lane.b32.xlu0 %v686, 96
    %v731 = vpop.permute.xlu0 %730
    %732 = vrot.lane.b32.xlu0 %v687, 96
    %v733 = vpop.permute.xlu0 %732
    %734 = vrot.lane.b32.xlu0 %v688, 96
    %v735 = vpop.permute.xlu0 %734
    %736 = vrot.lane.b32.xlu0 %v689, 96
    %v737 = vpop.permute.xlu0 %736
    %738 = vrot.lane.b32.xlu0 %v690, 96
    %v739 = vpop.permute.xlu0 %738
    %740 = vrot.lane.b32.xlu0 %v691, 96
    %v741 = vpop.permute.xlu0 %740
    %742 = vrot.lane.b32.xlu0 %v692, 96
    %v743 = vpop.permute.xlu0 %742
    %744 = vrot.lane.b32.xlu0 %v693, 96
    %v745 = vpop.permute.xlu0 %744
    %v746 = vsel %vm125, %v731, %v733
    %v747 = vsel %vm125, %v733, %v735
    %v748 = vsel %vm125, %v735, %v737
    %v749 = vsel %vm125, %v739, %v741
    %v750 = vsel %vm125, %v741, %v743
    %v751 = vsel %vm125, %v743, %v745
    %v758 = vmax.f32 %v722, %v746
    %v759 = vmax.f32 %v723, %v747
    %v760 = vmax.f32 %v724, %v748
    %v761 = vmax.f32 %v725, %v749
    %v762 = vmax.f32 %v726, %v750
    %v763 = vmax.f32 %v727, %v751
    %764 = vrot.lane.b32.xlu0 %v686, 94
    %v765 = vpop.permute.xlu0 %764
    %766 = vrot.lane.b32.xlu0 %v687, 94
    %v767 = vpop.permute.xlu0 %766
    %768 = vrot.lane.b32.xlu0 %v688, 94
    %v769 = vpop.permute.xlu0 %768
    %770 = vrot.lane.b32.xlu0 %v689, 94
    %v771 = vpop.permute.xlu0 %770
    %772 = vrot.lane.b32.xlu0 %v690, 94
    %v773 = vpop.permute.xlu0 %772
    %774 = vrot.lane.b32.xlu0 %v691, 94
    %v775 = vpop.permute.xlu0 %774
    %776 = vrot.lane.b32.xlu0 %v692, 94
    %v777 = vpop.permute.xlu0 %776
    %778 = vrot.lane.b32.xlu0 %v693, 94
    %v779 = vpop.permute.xlu0 %778
    %v780 = vsel %vm157, %v765, %v767
    %v781 = vsel %vm157, %v767, %v769
    %v782 = vsel %vm157, %v769, %v771
    %v783 = vsel %vm157, %v773, %v775
    %v784 = vsel %vm157, %v775, %v777
    %v785 = vsel %vm157, %v777, %v779
    %v792 = vmax.f32 %v758, %v780
    %v793 = vmax.f32 %v759, %v781
    %v794 = vmax.f32 %v760, %v782
    %v795 = vmax.f32 %v761, %v783
    %v796 = vmax.f32 %v762, %v784
    %v797 = vmax.f32 %v763, %v785
    %v798 = vld [vmem:[%s5] sm:$0xf]
    %vm799 = vcmask 130048
    %v801 = vsel %vm799, %v798, 0
    %803 = vmatprep.subr.mxu0 %v793
    %804 = vmatpush1.msra.mxu0 %v792
    %805 = vmatprep.subr.mxu0 %v796
    %806 = vmatpush1.msra.mxu0 %v795
    %807 = vmatprep.subr.mxu0 0.0
    %808 = vmatpush1.msra.mxu0 0.0
    %809 = vmatprep.subr.mxu0 0.0
    %810 = vmatpush1.msra.mxu0 0.0
    %811 = vmatprep.subr.mxu0 0.0
    %812 = vmatpush1.msra.mxu0 0.0
    %813 = vmatprep.subr.mxu0 0.0
    %814 = vmatpush1.msra.mxu0 0.0
    %815 = vmatprep.subr.mxu0 0.0
    %816 = vmatpush1.msra.mxu0 0.0
    %817 = vmatprep.subr.mxu0 0.0
    %818 = vmatpush1.msra.mxu0 0.0
    %819 = vmatprep.subr.mxu0 0.0
    %820 = vmatpush1.msra.mxu0 0.0
    %821 = vmatprep.subr.mxu0 0.0
    %822 = vmatpush1.msra.mxu0 0.0
    %823 = vmatprep.subr.mxu0 0.0
    %824 = vmatpush1.msra.mxu0 0.0
    %825 = vmatprep.subr.mxu0 0.0
    %826 = vmatpush1.msra.mxu0 0.0
    %827 = vmatprep.subr.mxu0 0.0
    %828 = vmatpush1.msra.mxu0 0.0
    %829 = vmatprep.subr.mxu0 0.0
    %830 = vmatpush1.msra.mxu0 0.0
    %831 = vmatprep.subr.mxu0 0.0
    %832 = vmatpush1.msra.mxu0 0.0
    %833 = vmatprep.subr.mxu0 0.0
    %834 = vmatpush1.msra.mxu0 0.0
    %835 = vmatprep.subr.mxu0 0.0
    %836 = vmatpush1.msra.mxu0 0.0
    %837 = vmatprep.subr.mxu0 0.0
    %838 = vmatpush1.msra.mxu0 0.0
    %839 = vmatprep.subr.mxu0 0.0
    %840 = vmatpush1.msra.mxu0 0.0
    %841 = vmatprep.subr.mxu0 0.0
    %842 = vmatpush1.msra.mxu0 0.0
    %843 = vmatprep.subr.mxu0 0.0
    %844 = vmatpush1.msra.mxu0 0.0
    %845 = vmatprep.subr.mxu0 0.0
    %846 = vmatpush1.msra.mxu0 0.0
    %847 = vmatprep.subr.mxu0 0.0
    %848 = vmatpush1.msra.mxu0 0.0
    %849 = vmatprep.subr.mxu0 0.0
    %850 = vmatpush1.msra.mxu0 0.0
    %851 = vmatprep.subr.mxu0 0.0
    %852 = vmatpush1.msra.mxu0 0.0
    %853 = vmatprep.subr.mxu0 0.0
    %854 = vmatpush1.msra.mxu0 0.0
    %855 = vmatprep.subr.mxu0 0.0
    %856 = vmatpush1.msra.mxu0 0.0
    %857 = vmatprep.subr.mxu0 0.0
    %858 = vmatpush1.msra.mxu0 0.0
    %859 = vmatprep.subr.mxu0 0.0
    %860 = vmatpush1.msra.mxu0 0.0
    %861 = vmatprep.subr.mxu0 0.0
    %862 = vmatpush1.msra.mxu0 0.0
    %863 = vmatprep.subr.mxu0 0.0
    %864 = vmatpush1.msra.mxu0 0.0
    %865 = vmatprep.subr.mxu0 0.0
    %866 = vmatpush1.msra.mxu0 0.0
    %867 = vmatprep.mubr.f32.mxu0 0.0
    %868 = vmatmul.mubr.f32.gmra.mrb[0].mxu0 %v801
    %v869 = vpop.f32.mrb[0].mxu0
    %v870 = vadd.f32 0.0, %v869
    %v871 = vpop.f32.mrb[0].mxu0
    %v872 = vadd.f32 0.0, %v871
    %873 = vdwg.mxu0
    %874 = vmatprep.subr.mxu0 0.0
    %875 = vmatpush1.msra.mxu0 %v794
    %876 = vmatprep.subr.mxu0 0.0
    %877 = vmatpush1.msra.mxu0 %v797
    %878 = vmatprep.subr.mxu0 0.0
    %879 = vmatpush1.msra.mxu0 0.0
    %880 = vmatprep.subr.mxu0 0.0
    %881 = vmatpush1.msra.mxu0 0.0
    %882 = vmatprep.subr.mxu0 0.0
    %883 = vmatpush1.msra.mxu0 0.0
    %884 = vmatprep.subr.mxu0 0.0
    %885 = vmatpush1.msra.mxu0 0.0
    %886 = vmatprep.subr.mxu0 0.0
    %887 = vmatpush1.msra.mxu0 0.0
    %888 = vmatprep.subr.mxu0 0.0
    %889 = vmatpush1.msra.mxu0 0.0
    %890 = vmatprep.subr.mxu0 0.0
    %891 = vmatpush1.msra.mxu0 0.0
    %892 = vmatprep.subr.mxu0 0.0
    %893 = vmatpush1.msra.mxu0 0.0
    %894 = vmatprep.subr.mxu0 0.0
    %895 = vmatpush1.msra.mxu0 0.0
    %896 = vmatprep.subr.mxu0 0.0
    %897 = vmatpush1.msra.mxu0 0.0
    %898 = vmatprep.subr.mxu0 0.0
    %899 = vmatpush1.msra.mxu0 0.0
    %900 = vmatprep.subr.mxu0 0.0
    %901 = vmatpush1.msra.mxu0 0.0
    %902 = vmatprep.subr.mxu0 0.0
    %903 = vmatpush1.msra.mxu0 0.0
    %904 = vmatprep.subr.mxu0 0.0
    %905 = vmatpush1.msra.mxu0 0.0
    %906 = vmatprep.subr.mxu0 0.0
    %907 = vmatpush1.msra.mxu0 0.0
    %908 = vmatprep.subr.mxu0 0.0
    %909 = vmatpush1.msra.mxu0 0.0
    %910 = vmatprep.subr.mxu0 0.0
    %911 = vmatpush1.msra.mxu0 0.0
    %912 = vmatprep.subr.mxu0 0.0
    %913 = vmatpush1.msra.mxu0 0.0
    %914 = vmatprep.subr.mxu0 0.0
    %915 = vmatpush1.msra.mxu0 0.0
    %916 = vmatprep.subr.mxu0 0.0
    %917 = vmatpush1.msra.mxu0 0.0
    %918 = vmatprep.subr.mxu0 0.0
    %919 = vmatpush1.msra.mxu0 0.0
    %920 = vmatprep.subr.mxu0 0.0
    %921 = vmatpush1.msra.mxu0 0.0
    %922 = vmatprep.subr.mxu0 0.0
    %923 = vmatpush1.msra.mxu0 0.0
    %924 = vmatprep.subr.mxu0 0.0
    %925 = vmatpush1.msra.mxu0 0.0
    %926 = vmatprep.subr.mxu0 0.0
    %927 = vmatpush1.msra.mxu0 0.0
    %928 = vmatprep.subr.mxu0 0.0
    %929 = vmatpush1.msra.mxu0 0.0
    %930 = vmatprep.subr.mxu0 0.0
    %931 = vmatpush1.msra.mxu0 0.0
    %932 = vmatprep.subr.mxu0 0.0
    %933 = vmatpush1.msra.mxu0 0.0
    %934 = vmatprep.subr.mxu0 0.0
    %935 = vmatpush1.msra.mxu0 0.0
    %936 = vmatprep.subr.mxu0 0.0
    %937 = vmatpush1.msra.mxu0 0.0
    %938 = vmatprep.mubr.f32.mxu0 0.0
    %939 = vmatmul.mubr.f32.gmra.mrb[0].mxu0 %v801
    %v940 = vpop.f32.mrb[0].mxu0
    %v941 = vadd.f32 0.0, %v940
    %v942 = vpop.f32.mrb[0].mxu0
    %943 = vdwg.mxu0
    %v947 = vrot.slane %v870, 1
    %v948 = vrot.slane %v872, 1
    %v949 = vrot.slane %v941, 1
    %950 = vrot.lane.b32.xlu0 %v947, 124
    %v951 = vpop.permute.xlu0 %950
    %952 = vrot.lane.b32.xlu0 %v948, 124
    %v953 = vpop.permute.xlu0 %952
    %954 = vrot.lane.b32.xlu0 %v949, 124
    %v955 = vpop.permute.xlu0 %954
    %v956 = vsel %vm410, %v951, %v953
    %v959 = vadd.f32 %v870, %v956
    %v960 = vadd.f32 %v941, %v955
    %v961 = vrot.slane %v870, 2
    %v962 = vrot.slane %v872, 2
    %v963 = vrot.slane %v941, 2
    %964 = vrot.lane.b32.xlu0 %v961, 64
    %v965 = vpop.permute.xlu0 %964
    %966 = vrot.lane.b32.xlu0 %v962, 64
    %v967 = vpop.permute.xlu0 %966
    %968 = vrot.lane.b32.xlu0 %v963, 64
    %v969 = vpop.permute.xlu0 %968
    %v970 = vsel %vm472, %v965, %v967
    %v973 = vadd.f32 %v959, %v970
    %v974 = vadd.f32 %v960, %v969
    %v975 = vrot.slane %v870, 3
    %v976 = vrot.slane %v872, 3
    %v977 = vrot.slane %v941, 3
    %978 = vrot.lane.b32.xlu0 %v975, 60
    %v979 = vpop.permute.xlu0 %978
    %980 = vrot.lane.b32.xlu0 %v976, 60
    %v981 = vpop.permute.xlu0 %980
    %982 = vrot.lane.b32.xlu0 %v977, 60
    %v983 = vpop.permute.xlu0 %982
    %v984 = vsel %vm504, %v979, %v981
    %v987 = vadd.f32 %v973, %v984
    %v988 = vadd.f32 %v974, %v983
    %990 = vrot.lane.b32.xlu0 %v988, 1
    %v991 = vpop.permute.xlu0 %990
    %vm993 = vcmask 7168
    %v994 = vsel %vm993, %v987, %v991
    %v995 = vld [vmem:[#allocation2] sm:$0x1]
    %997 = vset.pattern.permute.xlu0 0
    %998 = vperm.xlu0 %997, %v995
    %v999 = vpop.permute.xlu0 %998
    %v1001 = vlaneseq
    %v1002 = vshrl.u32 %v1001, 7
    %v1003 = vsub.s32 0, %v1002
    %v1004 = vrot.slane %v999, %v1003
    %v1005 = vadd.f32 %v994, %v1004
    %vm1006 = vcmask 8192
    %1007 = vst.msk [vmem:[#allocation3] sm:$0x1] %vm1006, %v1005
    // Predicated region
    $region30: #{cnn2d_forward.1} parent=1 // pred_check
      _
    $region31: #{cnn2d_forward.1} parent=1 // pred_check_branch
      %1009 = sbr.rel (0) target = $region33
    $region32: #{cnn2d_forward.1} parent=1 // pred_region
      %s1011 = ssub.s32 16, 16
      %1012 = vsyncadd [#allocation4], %s1011
      %s1014 = sshll.u32 [#allocation3], 4
      %s1015 = int_to_ptr.vmem [resolvable:$true] %s1014
      %1017 = dma.vmem_to_hbm [thread:$0]  %s1015, 16, %s7, [#allocation4]
    $region33: #{cnn2d_forward.1} parent=1 // pred_fallthru
      _
    // Predicated region
    $region34: #{cnn2d_forward.1} parent=1 // pred_check
      _
    $region35: #{cnn2d_forward.1} parent=1 // pred_check_branch
      %1019 = sbr.rel (0) target = $region37
    $region36: #{cnn2d_forward.1} parent=1 // pred_region
      %1020 = dma.done [#allocation4], 16
    $region37: #{cnn2d_forward.1} parent=1 // pred_fallthru
      _
    %1021 = vsyncpa [#allocation4], 1

</llo_original>
